<compile_context>
chip_gen: v7x
topology: tpu7x:2x2x1
jax: 0.10.0
libtpu: 0.0.40
codegen_flags: <defaults>
</compile_context>

<pallas_src>
import functools

import jax
import jax.numpy as jnp
from jax import lax
from jax.experimental import pallas as pl
from jax.experimental.pallas import tpu as pltpu


def _round_up(x, m):
    return (x + m - 1) // m * m


# ----------------------------------------------------------------------------- kernels

def _matmul_stats_kernel(a_ref, w_ref, y_ref, s1_ref, s2_ref, acc_ref):
    """Pass 1 (apply_norm=True): K-tiled conv-as-matmul.

    Accumulates in an f32 VMEM scratch across the K grid axis; on the last K step emits
    the activation tile as bf16 plus lane-dense per-tile channel sum / sum-of-squares
    (BatchNorm partial statistics) straight from the f32 accumulator.
    """
    k = pl.program_id(1)

    @pl.when(k == 0)
    def _():
        acc_ref[...] = jnp.zeros_like(acc_ref)

    acc_ref[...] += jnp.dot(a_ref[...], w_ref[...],
                            preferred_element_type=jnp.float32)

    @pl.when(k == pl.num_programs(1) - 1)
    def _():
        y = acc_ref[...]
        y_ref[...] = y.astype(y_ref.dtype)
        s1_ref[...] = jnp.sum(y, axis=0, keepdims=True)[None]
        s2_ref[...] = jnp.sum(y * y, axis=0, keepdims=True)[None]


def _matmul_act_kernel(a_ref, w_ref, o_ref, acc_ref, *, slope):
    """Single pass (apply_norm=False): K-tiled conv-as-matmul + LeakyReLU."""
    k = pl.program_id(1)

    @pl.when(k == 0)
    def _():
        acc_ref[...] = jnp.zeros_like(acc_ref)

    acc_ref[...] += jnp.dot(a_ref[...], w_ref[...],
                            preferred_element_type=jnp.float32)

    @pl.when(k == pl.num_programs(1) - 1)
    def _():
        y = acc_ref[...]
        o_ref[...] = jnp.where(y >= 0, y, slope * y).astype(o_ref.dtype)


def _affine_act_kernel(y_ref, scale_ref, shift_ref, o_ref, *, slope):
    """Pass 2: y * scale + shift (folded BatchNorm) + LeakyReLU. bf16 in / f32 out."""
    y = y_ref[...].astype(jnp.float32) * scale_ref[...] + shift_ref[...]
    o_ref[...] = jnp.where(y >= 0, y, slope * y)


# ----------------------------------------------------------------------------- wrapper

def downsampling_forward(x_nchw, weight, gamma, beta, *, stride=2,
                         apply_norm=True, eps=1e-5, slope=0.3, tile_m=1024):
    """Forward pass of `downsampling`. x_nchw: (N, Cin, H, W), weight: (Cout, Cin, K, K)."""
    N, Cin, H, W = x_nchw.shape
    Cout, _, Kh, Kw = weight.shape

    # NHWC, cast to bf16 immediately so the im2col patch matrix is built in bf16 only.
    x = jnp.transpose(x_nchw, (0, 2, 3, 1)).astype(jnp.bfloat16)

    # TF-style "SAME" padding for a strided conv (Conv2dSame semantics).
    Ho = -(-H // stride)
    Wo = -(-W // stride)
    pad_h = max((Ho - 1) * stride + Kh - H, 0)
    pad_w = max((Wo - 1) * stride + Kw - W, 0)
    x = jnp.pad(x, ((0, 0),
                    (pad_h // 2, pad_h - pad_h // 2),
                    (pad_w // 2, pad_w - pad_w // 2),
                    (0, 0)))

    # im2col (JAX glue, bf16): patch columns ordered (kh, kw, cin).
    cols = []
    for kh in range(Kh):
        for kw in range(Kw):
            cols.append(x[:, kh:kh + stride * Ho:stride, kw:kw + stride * Wo:stride, :])
    A = jnp.stack(cols, axis=3).reshape(N * Ho * Wo, Kh * Kw * Cin)

    # (Cout, Cin, Kh, Kw) -> (Kh, Kw, Cin, Cout) -> (Kh*Kw*Cin, Cout), bf16 operand.
    Wm = jnp.transpose(weight, (2, 3, 1, 0)).reshape(Kh * Kw * Cin, Cout).astype(jnp.bfloat16)

    M, Kd = A.shape
    LANE = 128

    Cout_pad = _round_up(Cout, LANE)
    Kd_pad = _round_up(Kd, LANE)

    # Contraction (K) tiling: single K step while the weight strip is small, otherwise a
    # 512-wide (multiple of 256 -> full MXU columns on v6e/v7x) K tile + f32 accumulator.
    if Kd_pad <= 1024:
        TK = Kd_pad
    else:
        TK = 512
        Kd_pad = _round_up(Kd_pad, TK)
    num_k = Kd_pad // TK

    # ---- per-generation VMEM budget & TILE_M sizing -----------------------------------
    try:
        vmem_cap = int(pltpu.get_tpu_info().vmem_capacity_bytes)
    except Exception:
        vmem_cap = 64 << 20            # conservative fallback (v7x per-core VMEM)
    budget = (vmem_cap * 3) // 4       # ~48 MiB on v7x, ~96 MiB on v5e/v6e

    def pass1_bytes(tm):
        a = 2 * tm * TK * 2                                # A tile, double-buffered bf16
        w = (1 if num_k == 1 else 2) * TK * Cout_pad * 2    # weights (single-buf if constant)
        y = 2 * tm * Cout_pad * 2                           # bf16 activation out, dbl-buffered
        st = 2 * 2 * 8 * Cout_pad * 4                       # two tiny stats blocks (sublane-padded)
        acc = tm * Cout_pad * 4                             # f32 accumulator scratch
        return a + w + y + st + acc

    def pass2_bytes(tm):
        return 2 * tm * Cout_pad * 2 + 2 * tm * Cout_pad * 4 + 4 * 8 * Cout_pad * 4

    TILE_M = max(16, min(tile_m, _round_up(M, 16)))
    if TILE_M >= M and M > 16:
        # Keep >= 2 M-tiles so the "parallel" axis can shard across v7x's two TensorCores.
        TILE_M = _round_up(-(-M // 2), 16)
    while TILE_M > 16 and pass1_bytes(TILE_M) > budget - (2 << 20):
        TILE_M = max(16, _round_up(TILE_M // 2, 16))

    M_pad = _round_up(M, TILE_M)
    num_tiles = M_pad // TILE_M

    # Zero-padding: padded rows / K columns / channels contribute nothing.
    A_p = jnp.pad(A, ((0, M_pad - M), (0, Kd_pad - Kd)))
    W_p = jnp.pad(Wm, ((0, Kd_pad - Kd), (0, Cout_pad - Cout)))

    vmem_limit = int(min(budget, max(16 << 20,
                                     max(pass1_bytes(TILE_M), pass2_bytes(TILE_M)) + (4 << 20))))

    cparams_mm = pltpu.CompilerParams(
        dimension_semantics=("parallel", "arbitrary"),
        vmem_limit_bytes=vmem_limit,
    )
    cparams_ew = pltpu.CompilerParams(
        dimension_semantics=("parallel",),
        vmem_limit_bytes=vmem_limit,
    )

    # Weight spec: block index is constant when num_k == 1 -> single buffer.
    if num_k == 1:
        try:
            w_spec = pl.BlockSpec((TK, Cout_pad), lambda i, k: (k, 0),
                                  pipeline_mode=pl.Buffered(1))
        except TypeError:   # older jax without pipeline_mode support
            w_spec = pl.BlockSpec((TK, Cout_pad), lambda i, k: (k, 0))
    else:
        w_spec = pl.BlockSpec((TK, Cout_pad), lambda i, k: (k, 0))

    a_spec = pl.BlockSpec((TILE_M, TK), lambda i, k: (i, k))

    cost_mm = pl.CostEstimate(
        flops=2 * M_pad * Kd_pad * Cout_pad,
        transcendentals=0,
        bytes_accessed=(M_pad * Kd_pad * 2 + num_tiles * Kd_pad * Cout_pad * 2
                        + M_pad * Cout_pad * (2 if apply_norm else 4)),
    )

    if apply_norm:
        # ---- pass 1: K-tiled matmul + per-tile partial BN statistics -------------------
        y_bf16, s1, s2 = pl.pallas_call(
            _matmul_stats_kernel,
            out_shape=(
                jax.ShapeDtypeStruct((M_pad, Cout_pad), jnp.bfloat16),
                jax.ShapeDtypeStruct((num_tiles, 1, Cout_pad), jnp.float32),
                jax.ShapeDtypeStruct((num_tiles, 1, Cout_pad), jnp.float32),
            ),
            grid=(num_tiles, num_k),
            in_specs=[a_spec, w_spec],
            out_specs=(
                pl.BlockSpec((TILE_M, Cout_pad), lambda i, k: (i, 0)),
                pl.BlockSpec((1, 1, Cout_pad), lambda i, k: (i, 0, 0)),
                pl.BlockSpec((1, 1, Cout_pad), lambda i, k: (i, 0, 0)),
            ),
            scratch_shapes=[pltpu.VMEM((TILE_M, Cout_pad), jnp.float32)],
            compiler_params=cparams_mm,
            cost_estimate=cost_mm,
        )(A_p, W_p)

        # ---- cheap stats reduction + BN fold (plain JAX, O(Cout)) ----------------------
        # NOTE: E[y^2] - E[y]^2 in f32; fine for typical activation scales but can lose
        #       precision when |mean| >> std (documented deviation from PyTorch BN).
        s1_tot = jnp.sum(s1, axis=(0, 1))                    # (Cout_pad,)
        s2_tot = jnp.sum(s2, axis=(0, 1))
        mean = s1_tot / float(M)                             # padded rows contribute 0
        var = jnp.maximum(s2_tot / float(M) - mean * mean, 0.0)   # biased var (BN training)
        inv = lax.rsqrt(var + eps)
        g = jnp.pad(gamma.astype(jnp.float32), (0, Cout_pad - Cout))
        b = jnp.pad(beta.astype(jnp.float32), (0, Cout_pad - Cout))
        scale = (g * inv).reshape(1, Cout_pad)
        shift = (b - mean * g * inv).reshape(1, Cout_pad)

        # ---- pass 2: tiled normalize + LeakyReLU (bf16 in / f32 out) -------------------
        # (input_output_aliases not applicable: input/output dtypes differ by design.)
        cost_ew = pl.CostEstimate(
            flops=4 * M_pad * Cout_pad,
            transcendentals=0,
            bytes_accessed=M_pad * Cout_pad * (2 + 4) + 2 * Cout_pad * 4,
        )
        out = pl.pallas_call(
            functools.partial(_affine_act_kernel, slope=slope),
            out_shape=jax.ShapeDtypeStruct((M_pad, Cout_pad), jnp.float32),
            grid=(num_tiles,),
            in_specs=[
                pl.BlockSpec((TILE_M, Cout_pad), lambda i: (i, 0)),
                pl.BlockSpec((1, Cout_pad), lambda i: (0, 0)),
                pl.BlockSpec((1, Cout_pad), lambda i: (0, 0)),
            ],
            out_specs=pl.BlockSpec((TILE_M, Cout_pad), lambda i: (i, 0)),
            compiler_params=cparams_ew,
            cost_estimate=cost_ew,
        )(y_bf16, scale, shift)
    else:
        # Single fused pass: K-tiled matmul + LeakyReLU (Conv2dSame here has bias=False).
        out = pl.pallas_call(
            functools.partial(_matmul_act_kernel, slope=slope),
            out_shape=jax.ShapeDtypeStruct((M_pad, Cout_pad), jnp.float32),
            grid=(num_tiles, num_k),
            in_specs=[a_spec, w_spec],
            out_specs=pl.BlockSpec((TILE_M, Cout_pad), lambda i, k: (i, 0)),
            scratch_shapes=[pltpu.VMEM((TILE_M, Cout_pad), jnp.float32)],
            compiler_params=cparams_mm,
            cost_estimate=cost_mm,
        )(A_p, W_p)

    y = out[:M, :Cout].reshape(N, Ho, Wo, Cout)
    return jnp.transpose(y, (0, 3, 1, 2))  # back to NCHW, f32


# ----------------------------------------------------------------------------- reference

def _reference(x, weight, gamma, beta, *, stride, apply_norm, eps=1e-5, slope=0.3):
    """Plain-JAX reference (inputs rounded to bf16 to mirror the kernel operand dtype)."""
    N, Cin, H, W = x.shape
    Cout, _, Kh, Kw = weight.shape
    Ho = -(-H // stride)
    Wo = -(-W // stride)
    ph = max((Ho - 1) * stride + Kh - H, 0)
    pw = max((Wo - 1) * stride + Kw - W, 0)
    xb = x.astype(jnp.bfloat16).astype(jnp.float32)
    wb = weight.astype(jnp.bfloat16).astype(jnp.float32)
    y = lax.conv_general_dilated(
        xb, wb, (stride, stride),
        [(ph // 2, ph - ph // 2), (pw // 2, pw - pw // 2)],
        dimension_numbers=("NCHW", "OIHW", "NCHW"))
    if apply_norm:
        mean = y.mean(axis=(0, 2, 3), keepdims=True)
        var = y.var(axis=(0, 2, 3), keepdims=True)
        y = (y - mean) * lax.rsqrt(var + eps)
        y = y * gamma.reshape(1, -1, 1, 1) + beta.reshape(1, -1, 1, 1)
    return jnp.where(y >= 0, y, slope * y)


if __name__ == "__main__":
    key = jax.random.PRNGKey(0)
    k_x, k_w = jax.random.split(key)

    # Small shapes consistent with the module: in=4, out=8, kernel=4, stride=2.
    N, Cin, H, W = 2, 4, 16, 16
    Cout, K = 8, 4

    x = jax.random.normal(k_x, (N, Cin, H, W), dtype=jnp.float32)

    # Deterministic synthetic init matching PyTorch Conv2d default (U(-1/sqrt(fan_in), +)).
    fan_in = Cin * K * K
    bound = 1.0 / (fan_in ** 0.5)
    weight = jax.random.uniform(k_w, (Cout, Cin, K, K), jnp.float32, -bound, bound)

    # BatchNorm2d default affine params.
    gamma = jnp.ones((Cout,), jnp.float32)
    beta = jnp.zeros((Cout,), jnp.float32)

    # apply_norm=True path (conv -> BN(train) -> LeakyReLU).
    y = downsampling_forward(x, weight, gamma, beta, stride=2, apply_norm=True)
    jax.block_until_ready(y)
    assert y.shape == (N, Cout, H // 2, W // 2), y.shape
    assert bool(jnp.all(jnp.isfinite(y)))
    y_ref = _reference(x, weight, gamma, beta, stride=2, apply_norm=True)
    assert bool(jnp.allclose(y, y_ref, rtol=5e-2, atol=5e-2)), \
        float(jnp.max(jnp.abs(y - y_ref)))

    # apply_norm=False single-pass path (conv -> LeakyReLU).
    y2 = downsampling_forward(x, weight, gamma, beta, stride=2, apply_norm=False)
    jax.block_until_ready(y2)
    assert y2.shape == (N, Cout, H // 2, W // 2), y2.shape
    assert bool(jnp.all(jnp.isfinite(y2)))
    y2_ref = _reference(x, weight, gamma, beta, stride=2, apply_norm=False)
    assert bool(jnp.allclose(y2, y2_ref, rtol=5e-2, atol=5e-2)), \
        float(jnp.max(jnp.abs(y2 - y2_ref)))

    print("KERNEL_OK")
</pallas_src>

<mosaic_0001>
module attributes {stable_mosaic.version = 11 : i64} {
  func.func @_matmul_stats_kernel(%arg0: i32, %arg1: i32, %arg2: memref<64x128xbf16, #tpu.memory_space<vmem>>, %arg3: memref<128x128xbf16, #tpu.memory_space<vmem>>, %arg4: memref<64x128xbf16, #tpu.memory_space<vmem>>, %arg5: memref<1x1x128xf32, #tpu.memory_space<vmem>>, %arg6: memref<1x1x128xf32, #tpu.memory_space<vmem>>, %arg7: memref<64x128xf32, #tpu.memory_space<vmem>>) attributes {dimension_semantics = [#tpu.dimension_semantics<parallel>, #tpu.dimension_semantics<arbitrary>], iteration_bounds = array<i64: 2, 1>, scalar_prefetch = 0 : i64, scratch_operands = 1 : i64, tpu.core_type = #tpu.core_type<tc>, window_params = [{transform_indices = @transform_0, window_bounds = array<i64: 64, 128>}, {pipeline_mode = #tpu.pipeline_mode<synchronous>, transform_indices = @transform_1, window_bounds = array<i64: 128, 128>}, {transform_indices = @transform_2, window_bounds = array<i64: 64, 128>}, {transform_indices = @transform_3, window_bounds = array<i64: 1, 1, 128>}, {transform_indices = @transform_4, window_bounds = array<i64: 1, 1, 128>}]} {
    %c0_i32 = arith.constant 0 : i32
    %0 = arith.cmpi eq, %arg1, %c0_i32 : i32
    %1 = arith.extui %0 : i1 to i32
    %c0_i32_0 = arith.constant 0 : i32
    %2 = arith.cmpi ne, %1, %c0_i32_0 : i32
    scf.if %2 {
      %cst_10 = arith.constant 0.000000e+00 : f32
      %12 = vector.broadcast %cst_10 : f32 to vector<64x128xf32>
      %c0_11 = arith.constant 0 : index
      %c0_12 = arith.constant 0 : index
      %13 = vector.load %arg7[%c0_11, %c0_12] : memref<64x128xf32, #tpu.memory_space<vmem>>, vector<64x128xf32>
      tpu.vector_store %arg7[%c0_11, %c0_12], %12 {strides = array<i32>} : memref<64x128xf32, #tpu.memory_space<vmem>>, vector<64x128xf32>,
    } else {
    }
    %c0 = arith.constant 0 : index
    %c0_1 = arith.constant 0 : index
    %3 = vector.load %arg7[%c0, %c0_1] : memref<64x128xf32, #tpu.memory_space<vmem>>, vector<64x128xf32>
    %c0_2 = arith.constant 0 : index
    %c0_3 = arith.constant 0 : index
    %4 = vector.load %arg2[%c0_2, %c0_3] : memref<64x128xbf16, #tpu.memory_space<vmem>>, vector<64x128xbf16>
    %c0_4 = arith.constant 0 : index
    %c0_5 = arith.constant 0 : index
    %5 = vector.load %arg3[%c0_4, %c0_5] : memref<128x128xbf16, #tpu.memory_space<vmem>>, vector<128x128xbf16>
    %cst = arith.constant dense<0.000000e+00> : vector<64x128xf32>
    %6 = tpu.matmul %4, %5, %cst {dimension_numbers = #tpu.dot_dimension_numbers<[1], [0], [0], [1], [0, 0, 1, 1], [], []>} : vector<64x128xbf16>, vector<128x128xbf16>, vector<64x128xf32> -> vector<64x128xf32>
    %7 = arith.addf %3, %6 : vector<64x128xf32>
    %c0_6 = arith.constant 0 : index
    %c0_7 = arith.constant 0 : index
    %8 = vector.load %arg7[%c0_6, %c0_7] : memref<64x128xf32, #tpu.memory_space<vmem>>, vector<64x128xf32>
    tpu.vector_store %arg7[%c0_6, %c0_7], %7 {strides = array<i32>} : memref<64x128xf32, #tpu.memory_space<vmem>>, vector<64x128xf32>,
    %c0_i32_8 = arith.constant 0 : i32
    %9 = arith.cmpi eq, %arg1, %c0_i32_8 : i32
    %10 = arith.extui %9 : i1 to i32
    %c0_i32_9 = arith.constant 0 : i32
    %11 = arith.cmpi ne, %10, %c0_i32_9 : i32
    scf.if %11 {
      %c0_10 = arith.constant 0 : index
      %c0_11 = arith.constant 0 : index
      %12 = vector.load %arg7[%c0_10, %c0_11] : memref<64x128xf32, #tpu.memory_space<vmem>>, vector<64x128xf32>
      %13 = arith.truncf %12 : vector<64x128xf32> to vector<64x128xbf16>
      %c0_12 = arith.constant 0 : index
      %c0_13 = arith.constant 0 : index
      %14 = vector.load %arg4[%c0_12, %c0_13] : memref<64x128xbf16, #tpu.memory_space<vmem>>, vector<64x128xbf16>
      tpu.vector_store %arg4[%c0_12, %c0_13], %13 {strides = array<i32>} : memref<64x128xbf16, #tpu.memory_space<vmem>>, vector<64x128xbf16>,
      %cst_14 = arith.constant dense<0.000000e+00> : vector<128xf32>
      %15 = vector.multi_reduction <add>, %12, %cst_14 [0] : vector<64x128xf32> to vector<128xf32>
      %16 = vector.shape_cast %15 : vector<128xf32> to vector<1x128xf32>
      %17 = vector.shape_cast %16 : vector<1x128xf32> to vector<1x1x128xf32>
      %c0_15 = arith.constant 0 : index
      %c0_16 = arith.constant 0 : index
      %c0_17 = arith.constant 0 : index
      %18 = vector.load %arg5[%c0_15, %c0_16, %c0_17] : memref<1x1x128xf32, #tpu.memory_space<vmem>>, vector<1x1x128xf32>
      tpu.vector_store %arg5[%c0_15, %c0_16, %c0_17], %17 {strides = array<i32>} : memref<1x1x128xf32, #tpu.memory_space<vmem>>, vector<1x1x128xf32>,
      %19 = arith.mulf %12, %12 : vector<64x128xf32>
      %cst_18 = arith.constant dense<0.000000e+00> : vector<128xf32>
      %20 = vector.multi_reduction <add>, %19, %cst_18 [0] : vector<64x128xf32> to vector<128xf32>
      %21 = vector.shape_cast %20 : vector<128xf32> to vector<1x128xf32>
      %22 = vector.shape_cast %21 : vector<1x128xf32> to vector<1x1x128xf32>
      %c0_19 = arith.constant 0 : index
      %c0_20 = arith.constant 0 : index
      %c0_21 = arith.constant 0 : index
      %23 = vector.load %arg6[%c0_19, %c0_20, %c0_21] : memref<1x1x128xf32, #tpu.memory_space<vmem>>, vector<1x1x128xf32>
      tpu.vector_store %arg6[%c0_19, %c0_20, %c0_21], %22 {strides = array<i32>} : memref<1x1x128xf32, #tpu.memory_space<vmem>>, vector<1x1x128xf32>,
    } else {
    }
    return
  }
  func.func @transform_0(%arg0: i32, %arg1: i32) -> (i32, i32) {
    %c0_i32 = arith.constant 0 : i32
    return %arg0, %arg1 : i32, i32
  }
  func.func @transform_1(%arg0: i32, %arg1: i32) -> (i32, i32) {
    %c0_i32 = arith.constant 0 : i32
    %c0_i32_0 = arith.constant 0 : i32
    return %arg1, %c0_i32 : i32, i32
  }
  func.func @transform_2(%arg0: i32, %arg1: i32) -> (i32, i32) {
    %c0_i32 = arith.constant 0 : i32
    %c0_i32_0 = arith.constant 0 : i32
    return %arg0, %c0_i32 : i32, i32
  }
  func.func @transform_3(%arg0: i32, %arg1: i32) -> (i32, i32, i32) {
    %c0_i32 = arith.constant 0 : i32
    %c0_i32_0 = arith.constant 0 : i32
    %c0_i32_1 = arith.constant 0 : i32
    return %arg0, %c0_i32, %c0_i32_0 : i32, i32, i32
  }
  func.func @transform_4(%arg0: i32, %arg1: i32) -> (i32, i32, i32) {
    %c0_i32 = arith.constant 0 : i32
    %c0_i32_0 = arith.constant 0 : i32
    %c0_i32_1 = arith.constant 0 : i32
    return %arg0, %c0_i32, %c0_i32_0 : i32, i32, i32
  }
}

</mosaic_0001>

<llo_original>
// kernel: tpu_custom_call.1
$region0: #{tpu_custom_call.1}
  #allocation0 [shape = 'u32[]', space=smem, size = 0x4, offset = 0x4, fixed_abs, tag = 'smem constant byte address 0x4 - core index']
  #allocation1 [shape = 'u32[144,128]{1,0:T(1,128)}', space=vmem, size = 0x12000, scoped, tag = 'internal scratch']
  #allocation2 [shape = 'f32[64,128]{1,0:T(8,128)}', space=vmem, size = 0x8000, scoped, tag = 'scratch operand']
  %s0 = inlined_call_operand.hbm [shape: bf16[128,128], index: 0, kind: input, shape index: {}]
  %s1 = inlined_call_operand.hbm [shape: bf16[128,128], index: 1, kind: input, shape index: {}]
  %s2 = inlined_call_operand.hbm [shape: bf16[128,128], index: 2, kind: output, shape index: {0}]
  %s3 = inlined_call_operand.hbm [shape: f32[2,1,128], index: 3, kind: output, shape index: {1}]
  %s4 = inlined_call_operand.hbm [shape: f32[2,1,128], index: 4, kind: output, shape index: {2}]
  %5 = xla_tuple %s2, %s3, %s4
  %s6 = sld [smem:[#allocation0]]
  $region73: #{tpu_custom_call.1} parent=0
    _
  %s8 = ssub.s32 1, %s6
  %s9 = scalar_select 0, %s8, %s6
  $region1: #{tpu_custom_call.1} parent=0
    #allocation3 [shape = 'u8[32768]{0}', space=vmem, size = 0x8000, scoped, tag = 'input window, operand 0']
    #allocation4 [shape = 's32[2]{0}', space=sflag, size = 0x8, scoped, tag = 'scoped memory for tpu_custom_call.1']
    #allocation5 [shape = 's32[2]{0}', space=sflag, size = 0x8, scoped, tag = 'scoped memory for tpu_custom_call.1']
    #allocation6 [shape = 'u8[32768]{0}', space=vmem, size = 0x8000, scoped, tag = 'input window, operand 1, single buffered']
    #allocation7 [shape = 's32[1]{0}', space=sflag, size = 0x4, scoped, tag = 'scoped memory for tpu_custom_call.1']
    #allocation8 [shape = 'u8[32768]{0}', space=vmem, size = 0x8000, scoped, tag = 'output window, operand 0']
    #allocation9 [shape = 'u8[1024]{0}', space=vmem, size = 0x400, scoped, tag = 'output window, operand 1']
    #allocation10 [shape = 's32[2]{0}', space=sflag, size = 0x8, scoped, tag = 'scoped memory for tpu_custom_call.1']
    #allocation11 [shape = 'u8[1024]{0}', space=vmem, size = 0x400, scoped, tag = 'output window, operand 2']
    %10 = vsyncpa [#allocation4], 0
    %s11 = scalar_lea.sflag [#allocation4], 1
    %12 = vsyncpa %s11, 0
    %13 = vsyncpa [#allocation7], 0
    %14 = vsyncpa [#allocation5], 0
    %s15 = scalar_lea.sflag [#allocation5], 1
    %16 = vsyncpa %s15, 0
    %17 = vsyncpa [#allocation10], 0
    %s18 = scalar_lea.sflag [#allocation10], 1
    %19 = vsyncpa %s18, 0
    loop: start=0, step=1, limit=4
    $region2: #{tpu_custom_call.1} parent=1 // loop_pre_header
      _
    $region3: #{tpu_custom_call.1} parent=1 // loop_header
      %s21 = sphi 0, %s25
      %p22 = scmp.ge.s32.totalorder %s21, 4
      %s28 = sphi 0, %s40
      %s29 = sphi 0, %s36
      %s30 = sphi 0, %s28
      %s31 = sphi 0, %s29
      %s32 = sphi 0, %s30
      %s33 = sphi 0, %s31
      %s45 = sphi 0, %s47
      %s48 = sphi 0, %s45
      %s49 = sphi 0, %s48
      %s65 = sphi 0, %s49
      %s71 = sphi 0, %s73
      %s74 = sphi 0, %s71
      %s75 = sphi 0, %s74
      %s91 = sphi 0, %s75
      %s97 = sphi 0, %s99
      %s100 = sphi 0, %s97
      %s101 = sphi 0, %s100
      %s117 = sphi 0, %s101
      %s123 = sphi 0, %s125
      %s126 = sphi 0, %s123
      %s127 = sphi 0, %s126
      %s143 = sphi 0, %s127
      %s149 = sphi 0, %s151
      %s152 = sphi 0, %s149
      %s153 = sphi 0, %s152
      %s169 = sphi 0, %s153
    $region4: #{tpu_custom_call.1} parent=1 // loop_header_branch
      %24 = sbr.rel (%p22) target = $region8
    $region5: #{tpu_custom_call.1} parent=1 // loop_body
      %s26 = ssub.s32 %s21, 1
      %s27 = ssub.s32 %s21, 2
      %s34 = sadd.s32 1, %s29
      %p35 = scmp.ge.s32.totalorder %s34, 1
      %s36 = scalar_select %p35, 0, %s34
      %s37 = sadd.s32 1, %s28
      %s38 = scalar_select %p35, %s37, %s28
      %p39 = scmp.ge.s32.totalorder %s38, 2
      %s40 = scalar_select %p39, 0, %s38
      %s41 = ssub.s32 %s28, %s40
      %s42 = ssub.s32 %s29, %s36
      %s43 = sor.u32 %s41, %s42
      %p44 = scmp.eq.s32.totalorder %s43, 0
      %s46 = sadd.s32 %s45, 1
      %s47 = scalar_select %p44, %s45, %s46
      %p50 = pneg %p44
      %p51 = scmp.eq.s32.totalorder %s21, 1
      %p52 = por %p50, %p51
      %p53 = scmp.ne.s32.totalorder %s45, %s48
      %p54 = scmp.eq.s32.totalorder %s21, 0
      %p55 = por %p53, %p54
      %p56 = scmp.ne.s32.totalorder %s45, %s48
      %p57 = scmp.eq.s32.totalorder %s26, 1
      %p58 = por %p56, %p57
      %p59 = scmp.ne.s32.totalorder %s48, %s49
      %p60 = scmp.eq.s32.totalorder %s26, 0
      %p61 = por %p59, %p60
      %p62 = scmp.ne.s32.totalorder %s48, %s49
      %p63 = scmp.eq.s32.totalorder %s27, 1
      %p64 = por %p62, %p63
      %p66 = scmp.ne.s32.totalorder %s49, %s65
      %p67 = scmp.eq.s32.totalorder %s27, 0
      %p68 = por %p66, %p67
      %s69 = ssub.s32 %s29, %s36
      %p70 = scmp.eq.s32.totalorder %s69, 0
      %s72 = sadd.s32 %s71, 1
      %s73 = scalar_select %p70, %s71, %s72
      %p76 = pneg %p70
      %p77 = scmp.eq.s32.totalorder %s21, 1
      %p78 = por %p76, %p77
      %p79 = scmp.ne.s32.totalorder %s71, %s74
      %p80 = scmp.eq.s32.totalorder %s21, 0
      %p81 = por %p79, %p80
      %p82 = scmp.ne.s32.totalorder %s71, %s74
      %p83 = scmp.eq.s32.totalorder %s26, 1
      %p84 = por %p82, %p83
      %p85 = scmp.ne.s32.totalorder %s74, %s75
      %p86 = scmp.eq.s32.totalorder %s26, 0
      %p87 = por %p85, %p86
      %p88 = scmp.ne.s32.totalorder %s74, %s75
      %p89 = scmp.eq.s32.totalorder %s27, 1
      %p90 = por %p88, %p89
      %p92 = scmp.ne.s32.totalorder %s75, %s91
      %p93 = scmp.eq.s32.totalorder %s27, 0
      %p94 = por %p92, %p93
      %s95 = ssub.s32 %s28, %s40
      %p96 = scmp.eq.s32.totalorder %s95, 0
      %s98 = sadd.s32 %s97, 1
      %s99 = scalar_select %p96, %s97, %s98
      %p102 = pneg %p96
      %p103 = scmp.eq.s32.totalorder %s21, 1
      %p104 = por %p102, %p103
      %p105 = scmp.ne.s32.totalorder %s97, %s100
      %p106 = scmp.eq.s32.totalorder %s21, 0
      %p107 = por %p105, %p106
      %p108 = scmp.ne.s32.totalorder %s97, %s100
      %p109 = scmp.eq.s32.totalorder %s26, 1
      %p110 = por %p108, %p109
      %p111 = scmp.ne.s32.totalorder %s100, %s101
      %p112 = scmp.eq.s32.totalorder %s26, 0
      %p113 = por %p111, %p112
      %p114 = scmp.ne.s32.totalorder %s100, %s101
      %p115 = scmp.eq.s32.totalorder %s27, 1
      %p116 = por %p114, %p115
      %p118 = scmp.ne.s32.totalorder %s101, %s117
      %p119 = scmp.eq.s32.totalorder %s27, 0
      %p120 = por %p118, %p119
      %s121 = ssub.s32 %s28, %s40
      %p122 = scmp.eq.s32.totalorder %s121, 0
      %s124 = sadd.s32 %s123, 1
      %s125 = scalar_select %p122, %s123, %s124
      %p128 = pneg %p122
      %p129 = scmp.eq.s32.totalorder %s21, 1
      %p130 = por %p128, %p129
      %p131 = scmp.ne.s32.totalorder %s123, %s126
      %p132 = scmp.eq.s32.totalorder %s21, 0
      %p133 = por %p131, %p132
      %p134 = scmp.ne.s32.totalorder %s123, %s126
      %p135 = scmp.eq.s32.totalorder %s26, 1
      %p136 = por %p134, %p135
      %p137 = scmp.ne.s32.totalorder %s126, %s127
      %p138 = scmp.eq.s32.totalorder %s26, 0
      %p139 = por %p137, %p138
      %p140 = scmp.ne.s32.totalorder %s126, %s127
      %p141 = scmp.eq.s32.totalorder %s27, 1
      %p142 = por %p140, %p141
      %p144 = scmp.ne.s32.totalorder %s127, %s143
      %p145 = scmp.eq.s32.totalorder %s27, 0
      %p146 = por %p144, %p145
      %s147 = ssub.s32 %s28, %s40
      %p148 = scmp.eq.s32.totalorder %s147, 0
      %s150 = sadd.s32 %s149, 1
      %s151 = scalar_select %p148, %s149, %s150
      %p154 = pneg %p148
      %p155 = scmp.eq.s32.totalorder %s21, 1
      %p156 = por %p154, %p155
      %p157 = scmp.ne.s32.totalorder %s149, %s152
      %p158 = scmp.eq.s32.totalorder %s21, 0
      %p159 = por %p157, %p158
      %p160 = scmp.ne.s32.totalorder %s149, %s152
      %p161 = scmp.eq.s32.totalorder %s26, 1
      %p162 = por %p160, %p161
      %p163 = scmp.ne.s32.totalorder %s152, %s153
      %p164 = scmp.eq.s32.totalorder %s26, 0
      %p165 = por %p163, %p164
      %p166 = scmp.ne.s32.totalorder %s152, %s153
      %p167 = scmp.eq.s32.totalorder %s27, 1
      %p168 = por %p166, %p167
      %p170 = scmp.ne.s32.totalorder %s153, %s169
      %p171 = scmp.eq.s32.totalorder %s27, 0
      %p172 = por %p170, %p171
      %p173 = scmp.le.s32.totalorder 1, %s21
      %p174 = scmp.lt.s32.totalorder %s21, 3
      %p175 = pnand %p173, %p174
      %p176 = pneg %p175
      // Predicated region
      $region9: #{tpu_custom_call.1} parent=5 // pred_check
        _
      $region10: #{tpu_custom_call.1} parent=5 // pred_check_branch
        %178 = sbr.rel (%p175) target = $region12
      $region11: #{tpu_custom_call.1} parent=5 // pred_region
        %s179 = ssub.s32 %s21, 1
        // Predicated region
        $region13: #{tpu_custom_call.1} parent=11 // pred_check
          %p180 = pneg %p87
        $region14: #{tpu_custom_call.1} parent=11 // pred_check_branch
          %182 = sbr.rel (%p180) target = $region16
        $region15: #{tpu_custom_call.1} parent=11 // pred_region
          %s183 = smul.u32 16, %s31
          %s185 = ssub.s32 1024, 1024
          %186 = vsyncadd [#allocation7], %s185
          %s187 = smul.addr %s183, 64
          %s188 = scalar_lea.hbm %s1, %s187
          %s189 = sshll.u32 [#allocation6], 4
          %s190 = int_to_ptr.vmem [resolvable:$true] %s189
          %195 = dma.hbm_to_vmem [thread:$0]  %s188, 1024, %s190, [#allocation7], 64, 64, 4
        $region16: #{tpu_custom_call.1} parent=11 // pred_fallthru
          _
      $region12: #{tpu_custom_call.1} parent=5 // pred_fallthru
        _
      %p196 = scmp.lt.s32.totalorder %s21, 2
      // Predicated region
      $region17: #{tpu_custom_call.1} parent=5 // pred_check
        %p197 = pneg %p196
      $region18: #{tpu_custom_call.1} parent=5 // pred_check_branch
        %199 = sbr.rel (%p197) target = $region20
      $region19: #{tpu_custom_call.1} parent=5 // pred_region
        // Predicated region
        $region21: #{tpu_custom_call.1} parent=19 // pred_check
          %p200 = pneg %p55
        $region22: #{tpu_custom_call.1} parent=19 // pred_check_branch
          %202 = sbr.rel (%p200) target = $region24
        $region23: #{tpu_custom_call.1} parent=19 // pred_region
          %s203 = sand.u32 %s45, 1
          %s204 = scalar_lea.sflag [#allocation4], %s203
          %s205 = sand.u32 %s45, 1
          %s206 = smul.addr %s205, 32
          %s207 = scalar_lea.vmem [#allocation3], %s206
          %s208 = smul.u32 8, %s28
          %s210 = ssub.s32 512, 512
          %211 = vsyncadd %s204, %s210
          %s212 = sadd.s32 %s29, %s208
          %s213 = smul.addr %s212, 64
          %s214 = scalar_lea.hbm %s0, %s213
          %s215 = sshll.u32 %s207, 4
          %s216 = int_to_ptr.vmem [resolvable:$true] %s215
          %221 = dma.hbm_to_vmem [thread:$0]  %s214, 512, %s216, %s204, 64, 64, 4
        $region24: #{tpu_custom_call.1} parent=19 // pred_fallthru
          _
      $region20: #{tpu_custom_call.1} parent=5 // pred_fallthru
        _
      %p222 = scmp.le.s32.totalorder 1, %s21
      %p223 = scmp.lt.s32.totalorder %s21, 3
      %p224 = pnand %p222, %p223
      %p225 = pneg %p224
      // Predicated region
      $region25: #{tpu_custom_call.1} parent=5 // pred_check
        _
      $region26: #{tpu_custom_call.1} parent=5 // pred_check_branch
        %227 = sbr.rel (%p224) target = $region28
      $region27: #{tpu_custom_call.1} parent=5 // pred_region
        %s228 = ssub.s32 %s21, 1
        %s229 = sand.u32 %s48, 1
        %s230 = scalar_lea.sflag [#allocation4], %s229
        %s231 = sand.u32 %s48, 1
        %s232 = smul.addr %s231, 32
        %s233 = scalar_lea.vmem [#allocation3], %s232
        // Predicated region
        $region29: #{tpu_custom_call.1} parent=27 // pred_check
          %p234 = pneg %p61
        $region30: #{tpu_custom_call.1} parent=27 // pred_check_branch
          %236 = sbr.rel (%p234) target = $region32
        $region31: #{tpu_custom_call.1} parent=27 // pred_region
          %237 = dma.done %s230, 512
        $region32: #{tpu_custom_call.1} parent=27 // pred_fallthru
          _
        // Predicated region
        $region33: #{tpu_custom_call.1} parent=27 // pred_check
          %p238 = pneg %p87
        $region34: #{tpu_custom_call.1} parent=27 // pred_check_branch
          %240 = sbr.rel (%p238) target = $region36
        $region35: #{tpu_custom_call.1} parent=27 // pred_region
          %241 = dma.done [#allocation7], 1024
        $region36: #{tpu_custom_call.1} parent=27 // pred_fallthru
          _
        %s242 = sand.u32 %s48, 1
        %s243 = scalar_lea.sflag [#allocation4], %s242
        %s244 = sand.u32 %s48, 1
        %s245 = smul.addr %s244, 32
        %s246 = scalar_lea.vmem [#allocation3], %s245
        %p247 = pneg %p61
        %p248 = pneg %p58
        %p249 = pneg %p87
        %p250 = pneg %p84
        %p251 = pneg %p113
        %p252 = pneg %p110
        %s253 = sand.u32 %s100, 1
        %s254 = scalar_lea.sflag [#allocation5], %s253
        %s255 = sand.u32 %s100, 1
        %s256 = smul.addr %s255, 32
        %s257 = scalar_lea.vmem [#allocation8], %s256
        %p258 = pneg %p139
        %p259 = pneg %p136
        %s260 = sand.u32 %s26, 1
        %s261 = scalar_lea.sflag [#allocation10], %s260
        %s262 = sand.u32 %s126, 1
        %s263 = scalar_lea.vmem [#allocation9], %s262
        %p264 = pneg %p165
        %p265 = pneg %p162
        %s266 = sand.u32 %s26, 1
        %s267 = scalar_lea.sflag [#allocation10], %s266
        %s268 = sand.u32 %s152, 1
        %s269 = scalar_lea.vmem [#allocation11], %s268
        %s270 = smul.u32 8, %s30
        %s271 = smul.u32 16, %s31
        %s272 = smul.u32 8, %s30
        %p274 = scmp.eq.s32.totalorder %s31, 0
        // Predicated region
        $region37: #{tpu_custom_call.1} parent=27 // pred_check
          %p275 = pneg %p274
        $region38: #{tpu_custom_call.1} parent=27 // pred_check_branch
          %277 = sbr.rel (%p275) target = $region40
        $region39: #{tpu_custom_call.1} parent=27 // pred_region
          %278 = vst [vmem:[#allocation2] sm:$0xff] 0.0
          %279 = vst [vmem:[#allocation2 + $0x8] sm:$0xff] 0.0
          %280 = vst [vmem:[#allocation2 + $0x10] sm:$0xff] 0.0
          %281 = vst [vmem:[#allocation2 + $0x18] sm:$0xff] 0.0
          %282 = vst [vmem:[#allocation2 + $0x20] sm:$0xff] 0.0
          %283 = vst [vmem:[#allocation2 + $0x28] sm:$0xff] 0.0
          %284 = vst [vmem:[#allocation2 + $0x30] sm:$0xff] 0.0
          %285 = vst [vmem:[#allocation2 + $0x38] sm:$0xff] 0.0
        $region40: #{tpu_custom_call.1} parent=27 // pred_fallthru
          _
        %v286 = vld [vmem:[#allocation2] sm:$0xff]
        %v287 = vld [vmem:[#allocation2 + $0x8] sm:$0xff]
        %v288 = vld [vmem:[#allocation2 + $0x10] sm:$0xff]
        %v289 = vld [vmem:[#allocation2 + $0x18] sm:$0xff]
        %v290 = vld [vmem:[#allocation2 + $0x20] sm:$0xff]
        %v291 = vld [vmem:[#allocation2 + $0x28] sm:$0xff]
        %v292 = vld [vmem:[#allocation2 + $0x30] sm:$0xff]
        %v293 = vld [vmem:[#allocation2 + $0x38] sm:$0xff]
        %v294 = vld [vmem:[%s233] sm:$0xf]
        %v295 = vld [vmem:[%s233 + $0x4] sm:$0xf]
        %v296 = vld [vmem:[%s233 + $0x8] sm:$0xf]
        %v297 = vld [vmem:[%s233 + $0xc] sm:$0xf]
        %v298 = vld [vmem:[%s233 + $0x10] sm:$0xf]
        %v299 = vld [vmem:[%s233 + $0x14] sm:$0xf]
        %v300 = vld [vmem:[%s233 + $0x18] sm:$0xf]
        %v301 = vld [vmem:[%s233 + $0x1c] sm:$0xf]
        %v302 = vld [vmem:[#allocation6] sm:$0xf]
        %v303 = vld [vmem:[#allocation6 + $0x4] sm:$0xf]
        %v304 = vld [vmem:[#allocation6 + $0x8] sm:$0xf]
        %v305 = vld [vmem:[#allocation6 + $0xc] sm:$0xf]
        %v306 = vld [vmem:[#allocation6 + $0x10] sm:$0xf]
        %v307 = vld [vmem:[#allocation6 + $0x14] sm:$0xf]
        %v308 = vld [vmem:[#allocation6 + $0x18] sm:$0xf]
        %v309 = vld [vmem:[#allocation6 + $0x1c] sm:$0xf]
        %v310 = vld [vmem:[#allocation6 + $0x20] sm:$0xf]
        %v311 = vld [vmem:[#allocation6 + $0x24] sm:$0xf]
        %v312 = vld [vmem:[#allocation6 + $0x28] sm:$0xf]
        %v313 = vld [vmem:[#allocation6 + $0x2c] sm:$0xf]
        %v314 = vld [vmem:[#allocation6 + $0x30] sm:$0xf]
        %v315 = vld [vmem:[#allocation6 + $0x34] sm:$0xf]
        %v316 = vld [vmem:[#allocation6 + $0x38] sm:$0xf]
        %v317 = vld [vmem:[#allocation6 + $0x3c] sm:$0xf]
        %v326 = vunpack.c.l.b16 %v294
        %v327 = vunpack.c.l.b16 %v295
        %v328 = vunpack.c.l.b16 %v296
        %v329 = vunpack.c.l.b16 %v297
        %v330 = vunpack.c.l.b16 %v298
        %v331 = vunpack.c.l.b16 %v299
        %v332 = vunpack.c.l.b16 %v300
        %v333 = vunpack.c.l.b16 %v301
        %v334 = vpack.c.b16 %v327, %v326
        %v335 = vpack.c.b16 %v329, %v328
        %v336 = vpack.c.b16 %v331, %v330
        %v337 = vpack.c.b16 %v333, %v332
        %v358 = vunpack.c.l.b16 %v302
        %v359 = vunpack.c.l.b16 %v303
        %v360 = vunpack.c.l.b16 %v304
        %v361 = vunpack.c.l.b16 %v305
        %v362 = vunpack.c.l.b16 %v306
        %v363 = vunpack.c.l.b16 %v307
        %v364 = vunpack.c.l.b16 %v308
        %v365 = vunpack.c.l.b16 %v309
        %v366 = vunpack.c.l.b16 %v310
        %v367 = vunpack.c.l.b16 %v311
        %v368 = vunpack.c.l.b16 %v312
        %v369 = vunpack.c.l.b16 %v313
        %v370 = vunpack.c.l.b16 %v314
        %v371 = vunpack.c.l.b16 %v315
        %v372 = vunpack.c.l.b16 %v316
        %v373 = vunpack.c.l.b16 %v317
        %v374 = vpack.c.b16 %v359, %v358
        %v375 = vpack.c.b16 %v361, %v360
        %v376 = vpack.c.b16 %v363, %v362
        %v377 = vpack.c.b16 %v365, %v364
        %v378 = vpack.c.b16 %v367, %v366
        %v379 = vpack.c.b16 %v369, %v368
        %v380 = vpack.c.b16 %v371, %v370
        %v381 = vpack.c.b16 %v373, %v372
        %390 = vmatprep.subr.bf16.mxu0 0
        %391 = vmatpush1.bf16.msra.mxu0 %v374
        %392 = vmatprep.subr.bf16.mxu0 0
        %393 = vmatpush1.bf16.msra.mxu0 %v375
        %394 = vmatprep.subr.bf16.mxu0 0
        %395 = vmatpush1.bf16.msra.mxu0 %v376
        %396 = vmatprep.subr.bf16.mxu0 0
        %397 = vmatpush1.bf16.msra.mxu0 %v377
        %398 = vmatprep.subr.bf16.mxu0 0
        %399 = vmatpush1.bf16.msra.mxu0 %v378
        %400 = vmatprep.subr.bf16.mxu0 0
        %401 = vmatpush1.bf16.msra.mxu0 %v379
        %402 = vmatprep.subr.bf16.mxu0 0
        %403 = vmatpush1.bf16.msra.mxu0 %v380
        %404 = vmatprep.subr.bf16.mxu0 0
        %405 = vmatpush1.bf16.msra.mxu0 %v381
        %406 = vmatprep.subr.bf16.mxu0 0
        %407 = vmatpush1.bf16.msra.mxu0 0
        %408 = vmatprep.subr.bf16.mxu0 0
        %409 = vmatpush1.bf16.msra.mxu0 0
        %410 = vmatprep.subr.bf16.mxu0 0
        %411 = vmatpush1.bf16.msra.mxu0 0
        %412 = vmatprep.subr.bf16.mxu0 0
        %413 = vmatpush1.bf16.msra.mxu0 0
        %414 = vmatprep.subr.bf16.mxu0 0
        %415 = vmatpush1.bf16.msra.mxu0 0
        %416 = vmatprep.subr.bf16.mxu0 0
        %417 = vmatpush1.bf16.msra.mxu0 0
        %418 = vmatprep.subr.bf16.mxu0 0
        %419 = vmatpush1.bf16.msra.mxu0 0
        %420 = vmatprep.subr.bf16.mxu0 0
        %421 = vmatpush1.bf16.msra.mxu0 0
        %422 = vmatprep.mubr.bf16.mxu0 0
        %423 = vmatmul.mubr.bf16.gmra.mrb[0].mxu0 %v334
        %v424 = vpop.f32.mrb[0].mxu0
        %v425 = vadd.f32 0.0, %v424
        %v426 = vpop.f32.mrb[0].mxu0
        %v427 = vpop.f32.mrb[0].mxu0
        %v428 = vadd.f32 0.0, %v427
        %v429 = vpop.f32.mrb[0].mxu0
        %430 = vmatprep.mubr.bf16.mxu0 0
        %431 = vmatmul.mubr.bf16.gmra.mrb[0].mxu0 %v335
        %v432 = vpop.f32.mrb[0].mxu0
        %v433 = vadd.f32 0.0, %v432
        %v434 = vpop.f32.mrb[0].mxu0
        %v435 = vpop.f32.mrb[0].mxu0
        %v436 = vadd.f32 0.0, %v435
        %v437 = vpop.f32.mrb[0].mxu0
        %438 = vmatprep.mubr.bf16.mxu0 0
        %439 = vmatmul.mubr.bf16.gmra.mrb[0].mxu0 %v336
        %v440 = vpop.f32.mrb[0].mxu0
        %v441 = vadd.f32 0.0, %v440
        %v442 = vpop.f32.mrb[0].mxu0
        %v443 = vpop.f32.mrb[0].mxu0
        %v444 = vadd.f32 0.0, %v443
        %v445 = vpop.f32.mrb[0].mxu0
        %446 = vmatprep.mubr.bf16.mxu0 0
        %447 = vmatmul.mubr.bf16.gmra.mrb[0].mxu0 %v337
        %v448 = vpop.f32.mrb[0].mxu0
        %v449 = vadd.f32 0.0, %v448
        %v450 = vpop.f32.mrb[0].mxu0
        %v451 = vpop.f32.mrb[0].mxu0
        %v452 = vadd.f32 0.0, %v451
        %v453 = vpop.f32.mrb[0].mxu0
        %454 = vdwg.mxu0
        %v455 = vadd.f32 %v286, %v425
        %v456 = vadd.f32 %v287, %v428
        %v457 = vadd.f32 %v288, %v433
        %v458 = vadd.f32 %v289, %v436
        %v459 = vadd.f32 %v290, %v441
        %v460 = vadd.f32 %v291, %v444
        %v461 = vadd.f32 %v292, %v449
        %v462 = vadd.f32 %v293, %v452
        %463 = vst [vmem:[#allocation2] sm:$0xff] %v455
        %464 = vst [vmem:[#allocation2 + $0x8] sm:$0xff] %v456
        %465 = vst [vmem:[#allocation2 + $0x10] sm:$0xff] %v457
        %466 = vst [vmem:[#allocation2 + $0x18] sm:$0xff] %v458
        %467 = vst [vmem:[#allocation2 + $0x20] sm:$0xff] %v459
        %468 = vst [vmem:[#allocation2 + $0x28] sm:$0xff] %v460
        %469 = vst [vmem:[#allocation2 + $0x30] sm:$0xff] %v461
        %470 = vst [vmem:[#allocation2 + $0x38] sm:$0xff] %v462
        // Predicated region
        $region41: #{tpu_custom_call.1} parent=27 // pred_check
          %p471 = pneg %p274
        $region42: #{tpu_custom_call.1} parent=27 // pred_check_branch
          %473 = sbr.rel (%p471) target = $region44
        $region43: #{tpu_custom_call.1} parent=27 // pred_region
          %v474 = vld [vmem:[#allocation2] sm:$0xff]
          %v475 = vld [vmem:[#allocation2 + $0x8] sm:$0xff]
          %v476 = vld [vmem:[#allocation2 + $0x10] sm:$0xff]
          %v477 = vld [vmem:[#allocation2 + $0x18] sm:$0xff]
          %v478 = vld [vmem:[#allocation2 + $0x20] sm:$0xff]
          %v479 = vld [vmem:[#allocation2 + $0x28] sm:$0xff]
          %v480 = vld [vmem:[#allocation2 + $0x30] sm:$0xff]
          %v481 = vld [vmem:[#allocation2 + $0x38] sm:$0xff]
          %v482 = vpack.c.bf16 %v475, %v474
          %v483 = vpack.c.bf16 %v477, %v476
          %v484 = vpack.c.bf16 %v479, %v478
          %v485 = vpack.c.bf16 %v481, %v480
          %v490 = vunpack.c.l.b16 %v482
          %v491 = vunpack.c.h.b16 %v482
          %v492 = vunpack.c.l.b16 %v483
          %v493 = vunpack.c.h.b16 %v483
          %v494 = vunpack.c.l.b16 %v484
          %v495 = vunpack.c.h.b16 %v484
          %v496 = vunpack.c.l.b16 %v485
          %v497 = vunpack.c.h.b16 %v485
          %v498 = vpack.c.b16 %v490, %v490
          %v499 = vpack.c.b16 %v491, %v491
          %v500 = vpack.c.b16 %v492, %v492
          %v501 = vpack.c.b16 %v493, %v493
          %v502 = vpack.c.b16 %v494, %v494
          %v503 = vpack.c.b16 %v495, %v495
          %v504 = vpack.c.b16 %v496, %v496
          %v505 = vpack.c.b16 %v497, %v497
          %514 = vst [vmem:[%s257] sm:$0xf] %v498
          %515 = vst [vmem:[%s257 + $0x4] sm:$0xf] %v499
          %516 = vst [vmem:[%s257 + $0x8] sm:$0xf] %v500
          %517 = vst [vmem:[%s257 + $0xc] sm:$0xf] %v501
          %518 = vst [vmem:[%s257 + $0x10] sm:$0xf] %v502
          %519 = vst [vmem:[%s257 + $0x14] sm:$0xf] %v503
          %520 = vst [vmem:[%s257 + $0x18] sm:$0xf] %v504
          %521 = vst [vmem:[%s257 + $0x1c] sm:$0xf] %v505
          %v522 = vadd.f32 %v474, %v475
          %v523 = vadd.f32 %v522, %v476
          %v524 = vadd.f32 %v523, %v477
          %v525 = vadd.f32 %v524, %v478
          %v526 = vadd.f32 %v525, %v479
          %v527 = vadd.f32 %v526, %v480
          %v528 = vadd.f32 %v527, %v481
          %v529 = vrot.slane %v528, 4
          %v530 = vadd.f32 %v528, %v529
          %v531 = vrot.slane %v530, 2
          %v532 = vadd.f32 %v530, %v531
          %v533 = vrot.slane %v532, 1
          %v534 = vadd.f32 %v532, %v533
          %535 = vst [vmem:[%s263] sm:$0x1] %v534
          %v536 = vmul.f32 %v474, %v474
          %v537 = vmul.f32 %v475, %v475
          %v538 = vmul.f32 %v476, %v476
          %v539 = vmul.f32 %v477, %v477
          %v540 = vmul.f32 %v478, %v478
          %v541 = vmul.f32 %v479, %v479
          %v542 = vmul.f32 %v480, %v480
          %v543 = vmul.f32 %v481, %v481
          %v544 = vadd.f32 %v536, %v537
          %v545 = vadd.f32 %v544, %v538
          %v546 = vadd.f32 %v545, %v539
          %v547 = vadd.f32 %v546, %v540
          %v548 = vadd.f32 %v547, %v541
          %v549 = vadd.f32 %v548, %v542
          %v550 = vadd.f32 %v549, %v543
          %v551 = vrot.slane %v550, 4
          %v552 = vadd.f32 %v550, %v551
          %v553 = vrot.slane %v552, 2
          %v554 = vadd.f32 %v552, %v553
          %v555 = vrot.slane %v554, 1
          %v556 = vadd.f32 %v554, %v555
          %557 = vst [vmem:[%s269] sm:$0x1] %v556
        $region44: #{tpu_custom_call.1} parent=27 // pred_fallthru
          _
        %s558 = sand.u32 %s100, 1
        %s559 = scalar_lea.sflag [#allocation5], %s558
        %s560 = sand.u32 %s100, 1
        %s561 = smul.addr %s560, 32
        %s562 = scalar_lea.vmem [#allocation8], %s561
        %s563 = sand.u32 %s26, 1
        %s564 = scalar_lea.sflag [#allocation10], %s563
        %s565 = sand.u32 %s126, 1
        %s566 = scalar_lea.vmem [#allocation9], %s565
        %s567 = sand.u32 %s26, 1
        %s568 = scalar_lea.sflag [#allocation10], %s567
        %s569 = sand.u32 %s152, 1
        %s570 = scalar_lea.vmem [#allocation11], %s569
        // Predicated region
        $region45: #{tpu_custom_call.1} parent=27 // pred_check
          %p571 = pneg %p110
        $region46: #{tpu_custom_call.1} parent=27 // pred_check_branch
          %573 = sbr.rel (%p571) target = $region48
        $region47: #{tpu_custom_call.1} parent=27 // pred_region
          %s574 = smul.u32 8, %s30
          %s576 = ssub.s32 512, 512
          %577 = vsyncadd %s559, %s576
          %s578 = smul.addr %s574, 64
          %s579 = scalar_lea.hbm %s2, %s578
          %s580 = sshll.u32 %s562, 4
          %s581 = int_to_ptr.vmem [resolvable:$true] %s580
          %586 = dma.vmem_to_hbm [thread:$0]  %s581, 512, %s579, %s559, 64, 64, 4
        $region48: #{tpu_custom_call.1} parent=27 // pred_fallthru
          _
        // Predicated region
        $region49: #{tpu_custom_call.1} parent=27 // pred_check
          %p587 = pneg %p136
        $region50: #{tpu_custom_call.1} parent=27 // pred_check_branch
          %589 = sbr.rel (%p587) target = $region52
        $region51: #{tpu_custom_call.1} parent=27 // pred_region
          %s591 = ssub.s32 16, 16
          %592 = vsyncadd %s564, %s591
          %s593 = smul.addr %s30, 16
          %s594 = scalar_lea.hbm %s3, %s593
          %s596 = sshll.u32 %s566, 4
          %s597 = int_to_ptr.vmem [resolvable:$true] %s596
          %599 = dma.vmem_to_hbm [thread:$0]  %s597, 16, %s594, %s564
        $region52: #{tpu_custom_call.1} parent=27 // pred_fallthru
          _
        // Predicated region
        $region53: #{tpu_custom_call.1} parent=27 // pred_check
          %p600 = pneg %p162
        $region54: #{tpu_custom_call.1} parent=27 // pred_check_branch
          %602 = sbr.rel (%p600) target = $region56
        $region55: #{tpu_custom_call.1} parent=27 // pred_region
          %s604 = ssub.s32 16, 16
          %605 = vsyncadd %s568, %s604
          %s606 = smul.addr %s30, 16
          %s607 = scalar_lea.hbm %s4, %s606
          %s609 = sshll.u32 %s570, 4
          %s610 = int_to_ptr.vmem [resolvable:$true] %s609
          %612 = dma.vmem_to_hbm [thread:$0]  %s610, 16, %s607, %s568
        $region56: #{tpu_custom_call.1} parent=27 // pred_fallthru
          _
      $region28: #{tpu_custom_call.1} parent=5 // pred_fallthru
        _
      %p613 = scmp.le.s32.totalorder 2, %s21
      // Predicated region
      $region57: #{tpu_custom_call.1} parent=5 // pred_check
        %p614 = pneg %p613
      $region58: #{tpu_custom_call.1} parent=5 // pred_check_branch
        %616 = sbr.rel (%p614) target = $region60
      $region59: #{tpu_custom_call.1} parent=5 // pred_region
        %s617 = ssub.s32 %s21, 2
        // Predicated region
        $region61: #{tpu_custom_call.1} parent=59 // pred_check
          %p618 = pneg %p116
        $region62: #{tpu_custom_call.1} parent=59 // pred_check_branch
          %620 = sbr.rel (%p618) target = $region64
        $region63: #{tpu_custom_call.1} parent=59 // pred_region
          %s621 = sand.u32 %s101, 1
          %s622 = scalar_lea.sflag [#allocation5], %s621
          %s623 = sand.u32 %s101, 1
          %s624 = smul.addr %s623, 32
          %s625 = scalar_lea.vmem [#allocation8], %s624
          %626 = dma.done %s622, 512
        $region64: #{tpu_custom_call.1} parent=59 // pred_fallthru
          _
        // Predicated region
        $region65: #{tpu_custom_call.1} parent=59 // pred_check
          %p627 = pneg %p142
        $region66: #{tpu_custom_call.1} parent=59 // pred_check_branch
          %629 = sbr.rel (%p627) target = $region68
        $region67: #{tpu_custom_call.1} parent=59 // pred_region
          %s630 = sand.u32 %s27, 1
          %s631 = scalar_lea.sflag [#allocation10], %s630
          %s632 = sand.u32 %s127, 1
          %s633 = scalar_lea.vmem [#allocation9], %s632
          %634 = dma.done %s631, 16
        $region68: #{tpu_custom_call.1} parent=59 // pred_fallthru
          _
        // Predicated region
        $region69: #{tpu_custom_call.1} parent=59 // pred_check
          %p635 = pneg %p168
        $region70: #{tpu_custom_call.1} parent=59 // pred_check_branch
          %637 = sbr.rel (%p635) target = $region72
        $region71: #{tpu_custom_call.1} parent=59 // pred_region
          %s638 = sand.u32 %s27, 1
          %s639 = scalar_lea.sflag [#allocation10], %s638
          %s640 = sand.u32 %s153, 1
          %s641 = scalar_lea.vmem [#allocation11], %s640
          %642 = dma.done %s639, 16
        $region72: #{tpu_custom_call.1} parent=59 // pred_fallthru
          _
      $region60: #{tpu_custom_call.1} parent=5 // pred_fallthru
        _
    $region6: #{tpu_custom_call.1} parent=1 // loop_footer
      %s25 = sadd.s32 1, %s21
    $region7: #{tpu_custom_call.1} parent=1 // loop_footer_branch
      %20 = sbr.rel target = $region3
    $region8: #{tpu_custom_call.1} parent=1 // loop_exit
      _
    %643 = vsyncpa [#allocation4], 1
    %s644 = scalar_lea.sflag [#allocation4], 1
    %645 = vsyncpa %s644, 1
    %646 = vsyncpa [#allocation7], 1
    %647 = vsyncpa [#allocation5], 1
    %s648 = scalar_lea.sflag [#allocation5], 1
    %649 = vsyncpa %s648, 1
    %650 = vsyncpa [#allocation10], 1
    %s651 = scalar_lea.sflag [#allocation10], 1
    %652 = vsyncpa %s651, 1

</llo_original>
